<compile_context>
chip_gen: v5e
topology: v5e:2x2
jax: 0.10.0
libtpu: 0.0.40
codegen_flags: <defaults>
</compile_context>

<pallas_src>
import jax
import jax.numpy as jnp
from jax.experimental import pallas as pl
from jax.experimental.pallas import tpu as pltpu


def _round_up(v: int, m: int) -> int:
    return (v + m - 1) // m * m


def _choose_tile(dim: int, align: int, target: int, max_waste: float = 0.125):
    """Pick (tile, padded_dim) with tile % align == 0, tile | padded_dim, low padding."""
    target = max(_round_up(target, align), align)
    dp_min = _round_up(dim, align)
    if dp_min <= target:
        # Small dim: one block covering the (alignment-)padded dim.
        return dp_min, dp_min
    # Try large tiles first, accept only if the padding overhead is small.
    t = target
    while t >= align and t % align == 0:
        dp = _round_up(dim, t)
        if (dp - dim) / dim <= max_waste:
            return t, dp
        t //= 2
    # Fall back: minimal (alignment-only) padding, largest aligned divisor <= target.
    t = (target // align) * align
    while t > align:
        if dp_min % t == 0:
            break
        t -= align
    return t, dp_min


def _nnl_kernel_single_k(x_ref, w_ref, b_ref, o_ref):
    # Whole reduction fits in one step: no accumulator scratch needed.
    # x_ref: (tm, Kp)  w_ref: (Kp, tn) = relu(W).T (pre-ReLU'd)  b_ref: (1, tn) f32
    acc = jnp.dot(x_ref[...], w_ref[...], preferred_element_type=jnp.float32)
    o_ref[...] = (acc + b_ref[...]).astype(o_ref.dtype)


def _nnl_kernel_acc(x_ref, w_ref, b_ref, o_ref, acc_ref):
    # x_ref: (tm, tk)  w_ref: (tk, tn) = relu(W).T tile  b_ref: (1, tn) f32
    # o_ref: (tm, tn)  acc_ref: (tm, tn) f32, resident across the K axis.
    k = pl.program_id(2)

    @pl.when(k == 0)
    def _():
        acc_ref[...] = jnp.zeros_like(acc_ref)

    acc_ref[...] += jnp.dot(x_ref[...], w_ref[...],
                            preferred_element_type=jnp.float32)

    @pl.when(k == pl.num_programs(2) - 1)
    def _():
        o_ref[...] = (acc_ref[...] + b_ref[...]).astype(o_ref.dtype)


def nonneg_linear(x, weight, bias=None, *, tm=512, tn=1024, tk=1024,
                  operand_dtype=jnp.bfloat16):
    """x: (B, in_features), weight: (out, in), bias: (out,) | None -> (B, out)."""
    B, K = x.shape
    N, K2 = weight.shape
    assert K == K2
    out_dtype = x.dtype
    op_dtype = jnp.dtype(operand_dtype)
    op_bytes = op_dtype.itemsize

    # Sublane alignment: bf16 packs 16 rows per vreg; f32 packs 8.
    m_align = 16 if op_dtype == jnp.dtype(jnp.bfloat16) else 8

    tm, Bp = _choose_tile(B, m_align, tm)
    tn, Np = _choose_tile(N, 128, tn)
    tk, Kp = _choose_tile(K, 128, tk)

    # v7x has 2 TensorCores: make sure at least one "parallel" axis has >=2
    # blocks for small problems (harmless on v5e/v6e).
    if Bp // tm == 1 and Np // tn == 1:
        if Np >= 256 and tn % 256 == 0:
            tn //= 2
        elif Bp >= 2 * m_align and tm % (2 * m_align) == 0:
            tm //= 2

    gm, gn, gk = Bp // tm, Np // tn, Kp // tk

    # One wrapper pass over W: relu (in f32) + transpose to (K, N) + operand
    # cast. Constant-folded by XLA when the weight is a jit-time constant.
    w_kn = jnp.maximum(weight, 0.0).T.astype(op_dtype)
    w_p = w_kn if (Kp == K and Np == N) else jnp.pad(w_kn, ((0, Kp - K), (0, Np - N)))

    x_c = x.astype(op_dtype)
    x_p = x_c if (Bp == B and Kp == K) else jnp.pad(x_c, ((0, Bp - B), (0, Kp - K)))

    b_vec = jnp.zeros((N,), jnp.float32) if bias is None else bias.astype(jnp.float32)
    b_p = jnp.pad(b_vec, (0, Np - N)).reshape(1, Np)

    # Advisory cost: padded flops + x/W HBM re-reads (x read gn times, W gm times).
    cost = pl.CostEstimate(
        flops=2 * Bp * Np * Kp,
        transcendentals=0,
        bytes_accessed=op_bytes * (Bp * Kp * gn + Kp * Np * gm) + 4 * (Bp * Np + Np),
    )
    # 48 MiB keeps headroom on v7x (64 MiB VMEM); tiles above use ~12-22 MiB.
    vmem_limit = 48 * 1024 * 1024

    if gk == 1:
        out = pl.pallas_call(
            _nnl_kernel_single_k,
            out_shape=jax.ShapeDtypeStruct((Bp, Np), out_dtype),
            grid_spec=pltpu.PrefetchScalarGridSpec(
                num_scalar_prefetch=0,
                grid=(gm, gn),
                in_specs=[
                    pl.BlockSpec((tm, tk), lambda i, j: (i, 0)),   # x tile (tk == Kp)
                    pl.BlockSpec((tk, tn), lambda i, j: (0, j)),   # relu(W).T tile
                    pl.BlockSpec((1, tn), lambda i, j: (0, j)),    # bias tile
                ],
                out_specs=pl.BlockSpec((tm, tn), lambda i, j: (i, j)),
            ),
            compiler_params=pltpu.CompilerParams(
                dimension_semantics=("parallel", "parallel"),
                vmem_limit_bytes=vmem_limit,
            ),
            cost_estimate=cost,
        )(x_p, w_p, b_p)
    else:
        out = pl.pallas_call(
            _nnl_kernel_acc,
            out_shape=jax.ShapeDtypeStruct((Bp, Np), out_dtype),
            grid_spec=pltpu.PrefetchScalarGridSpec(
                num_scalar_prefetch=0,
                grid=(gm, gn, gk),
                in_specs=[
                    pl.BlockSpec((tm, tk), lambda i, j, k: (i, k)),   # x tile
                    pl.BlockSpec((tk, tn), lambda i, j, k: (k, j)),   # relu(W).T tile
                    pl.BlockSpec((1, tn), lambda i, j, k: (0, j)),    # bias tile
                ],
                out_specs=pl.BlockSpec((tm, tn), lambda i, j, k: (i, j)),
                scratch_shapes=[pltpu.VMEM((tm, tn), jnp.float32)],
            ),
            compiler_params=pltpu.CompilerParams(
                dimension_semantics=("parallel", "parallel", "arbitrary"),
                vmem_limit_bytes=vmem_limit,
            ),
            cost_estimate=cost,
        )(x_p, w_p, b_p)

    return out[:B, :N]


def nonneg_linear_ref(x, weight, bias):
    w = jnp.maximum(weight, 0.0)
    y = jnp.dot(x, w.T, precision=jax.lax.Precision.HIGHEST)
    return y if bias is None else y + bias[None, :]


if __name__ == "__main__":
    key = jax.random.PRNGKey(0)
    kx, kw, kb, kx2, kw2, kb2 = jax.random.split(key, 6)

    # Case 1: small PIPNet-like head (exercises the single-K-step variant).
    B, IN, OUT = 8, 32, 16
    x = jax.random.normal(kx, (B, IN), dtype=jnp.float32)
    weight = jax.random.uniform(kw, (OUT, IN), dtype=jnp.float32,
                                minval=-1.0, maxval=1.0) / jnp.sqrt(IN)
    bias = jax.random.uniform(kb, (OUT,), dtype=jnp.float32,
                              minval=-0.1, maxval=0.1)
    # normalization_multiplier exists as a parameter but is unused in forward().
    normalization_multiplier = jnp.ones((1,), dtype=jnp.float32)

    y_ref = nonneg_linear_ref(x, weight, bias)
    y_bf16 = jax.block_until_ready(nonneg_linear(x, weight, bias))
    y_f32 = jax.block_until_ready(
        nonneg_linear(x, weight, bias, operand_dtype=jnp.float32))
    assert y_bf16.shape == (B, OUT) and y_f32.shape == (B, OUT)
    assert jnp.allclose(y_f32, y_ref, atol=5e-3, rtol=5e-3), "f32 path mismatch"
    assert jnp.allclose(y_bf16, y_ref, atol=5e-2, rtol=5e-2), "bf16 path mismatch"

    # Case 2: forces a multi-K-step grid (tk=128) to exercise the accumulator
    # variant and the megacore split heuristic.
    B2, IN2, OUT2 = 16, 384, 24
    x2 = jax.random.normal(kx2, (B2, IN2), dtype=jnp.float32)
    w2 = jax.random.uniform(kw2, (OUT2, IN2), dtype=jnp.float32,
                            minval=-1.0, maxval=1.0) / jnp.sqrt(IN2)
    b2 = jax.random.uniform(kb2, (OUT2,), dtype=jnp.float32,
                            minval=-0.1, maxval=0.1)

    y2_ref = nonneg_linear_ref(x2, w2, b2)
    y2_f32 = jax.block_until_ready(
        nonneg_linear(x2, w2, b2, tk=128, operand_dtype=jnp.float32))
    y2_bf16 = jax.block_until_ready(nonneg_linear(x2, w2, b2, tk=128))
    assert jnp.allclose(y2_f32, y2_ref, atol=5e-3, rtol=5e-3), "multi-K f32 mismatch"
    assert jnp.allclose(y2_bf16, y2_ref, atol=5e-2, rtol=5e-2), "multi-K bf16 mismatch"

    print("KERNEL_OK")
</pallas_src>

<mosaic_0001>
module attributes {stable_mosaic.version = 11 : i64} {
  func.func @_nnl_kernel_single_k(%arg0: i32, %arg1: i32, %arg2: memref<16x128xbf16, #tpu.memory_space<vmem>>, %arg3: memref<128x128xbf16, #tpu.memory_space<vmem>>, %arg4: memref<1x128xf32, #tpu.memory_space<vmem>>, %arg5: memref<16x128xf32, #tpu.memory_space<vmem>>) attributes {dimension_semantics = [#tpu.dimension_semantics<parallel>, #tpu.dimension_semantics<parallel>], iteration_bounds = array<i64: 1, 1>, scalar_prefetch = 0 : i64, scratch_operands = 0 : i64, tpu.core_type = #tpu.core_type<tc>, window_params = [{transform_indices = @transform_0, window_bounds = array<i64: 16, 128>}, {transform_indices = @transform_1, window_bounds = array<i64: 128, 128>}, {transform_indices = @transform_2, window_bounds = array<i64: 1, 128>}, {transform_indices = @transform_3, window_bounds = array<i64: 16, 128>}]} {
    %c0 = arith.constant 0 : index
    %c0_0 = arith.constant 0 : index
    %0 = vector.load %arg2[%c0, %c0_0] : memref<16x128xbf16, #tpu.memory_space<vmem>>, vector<16x128xbf16>
    %c0_1 = arith.constant 0 : index
    %c0_2 = arith.constant 0 : index
    %1 = vector.load %arg3[%c0_1, %c0_2] : memref<128x128xbf16, #tpu.memory_space<vmem>>, vector<128x128xbf16>
    %cst = arith.constant dense<0.000000e+00> : vector<16x128xf32>
    %2 = tpu.matmul %0, %1, %cst {dimension_numbers = #tpu.dot_dimension_numbers<[1], [0], [0], [1], [0, 0, 1, 1], [], []>} : vector<16x128xbf16>, vector<128x128xbf16>, vector<16x128xf32> -> vector<16x128xf32>
    %c0_3 = arith.constant 0 : index
    %c0_4 = arith.constant 0 : index
    %3 = vector.load %arg4[%c0_3, %c0_4] : memref<1x128xf32, #tpu.memory_space<vmem>>, vector<1x128xf32>
    %4 = vector.broadcast %3 : vector<1x128xf32> to vector<16x128xf32>
    %5 = arith.addf %2, %4 : vector<16x128xf32>
    %c0_5 = arith.constant 0 : index
    %c0_6 = arith.constant 0 : index
    %6 = vector.load %arg5[%c0_5, %c0_6] : memref<16x128xf32, #tpu.memory_space<vmem>>, vector<16x128xf32>
    tpu.vector_store %arg5[%c0_5, %c0_6], %5 {strides = array<i32>} : memref<16x128xf32, #tpu.memory_space<vmem>>, vector<16x128xf32>,
    return
  }
  func.func @transform_0(%arg0: i32, %arg1: i32) -> (i32, i32) {
    %c0_i32 = arith.constant 0 : i32
    %c0_i32_0 = arith.constant 0 : i32
    return %arg0, %c0_i32 : i32, i32
  }
  func.func @transform_1(%arg0: i32, %arg1: i32) -> (i32, i32) {
    %c0_i32 = arith.constant 0 : i32
    %c0_i32_0 = arith.constant 0 : i32
    return %c0_i32, %arg1 : i32, i32
  }
  func.func @transform_2(%arg0: i32, %arg1: i32) -> (i32, i32) {
    %c0_i32 = arith.constant 0 : i32
    %c0_i32_0 = arith.constant 0 : i32
    return %c0_i32, %arg1 : i32, i32
  }
  func.func @transform_3(%arg0: i32, %arg1: i32) -> (i32, i32) {
    %c0_i32 = arith.constant 0 : i32
    return %arg0, %arg1 : i32, i32
  }
}

</mosaic_0001>

<llo_original>
// kernel: tpu_custom_call.1
$region0: #{tpu_custom_call.1}
  #allocation0 [shape = 'u32[]', space=smem, size = 0x4, offset = 0x4, fixed_abs, tag = 'smem constant byte address 0x4 - core index']
  #allocation1 [shape = 'u32[72,128]{1,0:T(1,128)}', space=vmem, size = 0x9000, scoped, tag = 'internal scratch']
  %s0 = inlined_call_operand.hbm [shape: bf16[16,128], index: 0, kind: input, shape index: {}]
  %s1 = inlined_call_operand.hbm [shape: bf16[128,128], index: 1, kind: input, shape index: {}]
  %s2 = inlined_call_operand.vmem [shape: f32[1,128], index: 2, kind: input, shape index: {}]
  %s3 = inlined_call_operand.hbm [shape: f32[16,128], index: 3, kind: output, shape index: {}]
  %s4 = sld [smem:[#allocation0]]
  $region30: #{tpu_custom_call.1} parent=0
    _
  %s6 = ssub.s32 1, %s4
  %s7 = scalar_select 0, %s6, %s4
  $region1: #{tpu_custom_call.1} parent=0
    #allocation2 [shape = 'u8[4096]{0}', space=vmem, size = 0x1000, scoped, tag = 'input window, operand 0, single buffered']
    #allocation3 [shape = 's32[1]{0}', space=sflag, size = 0x4, scoped, tag = 'scoped memory for tpu_custom_call.1']
    #allocation4 [shape = 's32[1]{0}', space=sflag, size = 0x4, scoped, tag = 'scoped memory for tpu_custom_call.1']
    #allocation5 [shape = 'u8[32768]{0}', space=vmem, size = 0x8000, scoped, tag = 'input window, operand 1, single buffered']
    #allocation6 [shape = 's32[1]{0}', space=sflag, size = 0x4, scoped, tag = 'scoped memory for tpu_custom_call.1']
    #allocation7 [shape = 'u8[8192]{0}', space=vmem, size = 0x2000, scoped, tag = 'output window, operand 0, single buffered']
    %8 = vsyncpa [#allocation3], 0
    %9 = vsyncpa [#allocation6], 0
    %10 = vsyncpa [#allocation4], 0
    // Predicated region
    $region2: #{tpu_custom_call.1} parent=1 // pred_check
      _
    $region3: #{tpu_custom_call.1} parent=1 // pred_check_branch
      %12 = sbr.rel (0) target = $region5
    $region4: #{tpu_custom_call.1} parent=1 // pred_region
      %14 = vsyncadd [#allocation3], 0
      %s15 = sshll.u32 %s0, 4
      %s16 = int_to_ptr.hbm [resolvable:$true] %s15
      %s17 = sshll.u32 [#allocation2], 4
      %s18 = int_to_ptr.vmem [resolvable:$true] %s17
      %23 = dma.hbm_to_vmem [thread:$0]  %s16, 128, %s18, [#allocation3], 64, 64, 4
    $region5: #{tpu_custom_call.1} parent=1 // pred_fallthru
      _
    // Predicated region
    $region6: #{tpu_custom_call.1} parent=1 // pred_check
      _
    $region7: #{tpu_custom_call.1} parent=1 // pred_check_branch
      %25 = sbr.rel (0) target = $region9
    $region8: #{tpu_custom_call.1} parent=1 // pred_region
      %27 = vsyncadd [#allocation6], 0
      %s28 = sshll.u32 %s1, 4
      %s29 = int_to_ptr.hbm [resolvable:$true] %s28
      %s30 = sshll.u32 [#allocation5], 4
      %s31 = int_to_ptr.vmem [resolvable:$true] %s30
      %36 = dma.hbm_to_vmem [thread:$0]  %s29, 1024, %s31, [#allocation6], 64, 64, 4
    $region9: #{tpu_custom_call.1} parent=1 // pred_fallthru
      _
    // Predicated region
    $region10: #{tpu_custom_call.1} parent=1 // pred_check
      _
    $region11: #{tpu_custom_call.1} parent=1 // pred_check_branch
      %38 = sbr.rel (0) target = $region13
    $region12: #{tpu_custom_call.1} parent=1 // pred_region
      _
    $region13: #{tpu_custom_call.1} parent=1 // pred_fallthru
      _
    // Predicated region
    $region14: #{tpu_custom_call.1} parent=1 // pred_check
      _
    $region15: #{tpu_custom_call.1} parent=1 // pred_check_branch
      %40 = sbr.rel (0) target = $region17
    $region16: #{tpu_custom_call.1} parent=1 // pred_region
      %42 = dma.done [#allocation3], 128
    $region17: #{tpu_custom_call.1} parent=1 // pred_fallthru
      _
    // Predicated region
    $region18: #{tpu_custom_call.1} parent=1 // pred_check
      _
    $region19: #{tpu_custom_call.1} parent=1 // pred_check_branch
      %44 = sbr.rel (0) target = $region21
    $region20: #{tpu_custom_call.1} parent=1 // pred_region
      %46 = dma.done [#allocation6], 1024
    $region21: #{tpu_custom_call.1} parent=1 // pred_fallthru
      _
    %v47 = vld [vmem:[#allocation2] sm:$0xf]
    %v48 = vld [vmem:[#allocation2 + $0x4] sm:$0xf]
    %v49 = vld [vmem:[#allocation5] sm:$0xf]
    %v50 = vld [vmem:[#allocation5 + $0x4] sm:$0xf]
    %v51 = vld [vmem:[#allocation5 + $0x8] sm:$0xf]
    %v52 = vld [vmem:[#allocation5 + $0xc] sm:$0xf]
    %v53 = vld [vmem:[#allocation5 + $0x10] sm:$0xf]
    %v54 = vld [vmem:[#allocation5 + $0x14] sm:$0xf]
    %v55 = vld [vmem:[#allocation5 + $0x18] sm:$0xf]
    %v56 = vld [vmem:[#allocation5 + $0x1c] sm:$0xf]
    %v57 = vld [vmem:[#allocation5 + $0x20] sm:$0xf]
    %v58 = vld [vmem:[#allocation5 + $0x24] sm:$0xf]
    %v59 = vld [vmem:[#allocation5 + $0x28] sm:$0xf]
    %v60 = vld [vmem:[#allocation5 + $0x2c] sm:$0xf]
    %v61 = vld [vmem:[#allocation5 + $0x30] sm:$0xf]
    %v62 = vld [vmem:[#allocation5 + $0x34] sm:$0xf]
    %v63 = vld [vmem:[#allocation5 + $0x38] sm:$0xf]
    %v64 = vld [vmem:[#allocation5 + $0x3c] sm:$0xf]
    %v65 = vld [vmem:[%s2] sm:$0x1]
    %v67 = vperm.slane %v65, 0
    %v71 = vunpack.c.l.b16 %v47
    %v72 = vunpack.c.l.b16 %v48
    %v73 = vpack.c.b16 %v72, %v71
    %v91 = vunpack.c.l.b16 %v49
    %v92 = vunpack.c.l.b16 %v50
    %v93 = vunpack.c.l.b16 %v51
    %v94 = vunpack.c.l.b16 %v52
    %v95 = vunpack.c.l.b16 %v53
    %v96 = vunpack.c.l.b16 %v54
    %v97 = vunpack.c.l.b16 %v55
    %v98 = vunpack.c.l.b16 %v56
    %v99 = vunpack.c.l.b16 %v57
    %v100 = vunpack.c.l.b16 %v58
    %v101 = vunpack.c.l.b16 %v59
    %v102 = vunpack.c.l.b16 %v60
    %v103 = vunpack.c.l.b16 %v61
    %v104 = vunpack.c.l.b16 %v62
    %v105 = vunpack.c.l.b16 %v63
    %v106 = vunpack.c.l.b16 %v64
    %v107 = vpack.c.b16 %v92, %v91
    %v108 = vpack.c.b16 %v94, %v93
    %v109 = vpack.c.b16 %v96, %v95
    %v110 = vpack.c.b16 %v98, %v97
    %v111 = vpack.c.b16 %v100, %v99
    %v112 = vpack.c.b16 %v102, %v101
    %v113 = vpack.c.b16 %v104, %v103
    %v114 = vpack.c.b16 %v106, %v105
    %123 = vmatpush.bf16.msra.mxu0 %v114
    %124 = vmatpush.bf16.msra.mxu0 %v113
    %125 = vmatpush.bf16.msra.mxu0 %v112
    %126 = vmatpush.bf16.msra.mxu0 %v111
    %127 = vmatpush.bf16.msra.mxu0 %v110
    %128 = vmatpush.bf16.msra.mxu0 %v109
    %129 = vmatpush.bf16.msra.mxu0 %v108
    %130 = vmatpush.bf16.msra.mxu0 %v107
    %131 = vmatmul.bf16.gmra.mxu0 %v73
    %v132 = vpop.f32.mrf.mxu0
    %v133 = vadd.f32 %v67, %v132
    %v134 = vpop.f32.mrf.mxu0
    %v135 = vadd.f32 %v67, %v134
    %136 = vdwg.mxu0
    %137 = vst [vmem:[#allocation7] sm:$0xff] %v133
    %138 = vst [vmem:[#allocation7 + $0x8] sm:$0xff] %v135
    // Predicated region
    $region22: #{tpu_custom_call.1} parent=1 // pred_check
      _
    $region23: #{tpu_custom_call.1} parent=1 // pred_check_branch
      %140 = sbr.rel (0) target = $region25
    $region24: #{tpu_custom_call.1} parent=1 // pred_region
      %142 = vsyncadd [#allocation4], 0
      %s143 = sshll.u32 [#allocation7], 4
      %s144 = int_to_ptr.vmem [resolvable:$true] %s143
      %s145 = sshll.u32 %s3, 4
      %s146 = int_to_ptr.hbm [resolvable:$true] %s145
      %151 = dma.vmem_to_hbm [thread:$0]  %s144, 256, %s146, [#allocation4], 128, 128, 8
    $region25: #{tpu_custom_call.1} parent=1 // pred_fallthru
      _
    // Predicated region
    $region26: #{tpu_custom_call.1} parent=1 // pred_check
      _
    $region27: #{tpu_custom_call.1} parent=1 // pred_check_branch
      %153 = sbr.rel (0) target = $region29
    $region28: #{tpu_custom_call.1} parent=1 // pred_region
      %155 = dma.done [#allocation4], 256
    $region29: #{tpu_custom_call.1} parent=1 // pred_fallthru
      _
    %156 = vsyncpa [#allocation3], 1
    %157 = vsyncpa [#allocation6], 1
    %158 = vsyncpa [#allocation4], 1

</llo_original>
